<compile_context>
chip_gen: v7x
topology: tpu7x:2x2x1
jax: 0.10.0
libtpu: 0.0.40
codegen_flags: <defaults>
</compile_context>

<pallas_src>
import functools

import jax
import jax.numpy as jnp
from jax import lax
from jax.experimental import pallas as pl
from jax.experimental.pallas import tpu as pltpu


def _round_up(x, m):
    return ((x + m - 1) // m) * m


def _shoot_infs(x):
    """JAX equivalent of shoot_infs: inf entries -> max of tensor (with infs zeroed)."""
    mask = jnp.isinf(x)
    x0 = jnp.where(mask, jnp.zeros_like(x), x)
    m = jnp.max(x0)
    return jnp.where(mask, m, x0)


def _sinkhorn_kernel(logits_ref, r_ref, out_ref, *, num_iters, inv_epsilon,
                     n_valid, k_valid):
    # logits_ref: (Np, Kp) float; r_ref: (1, Kp) f32; out_ref: (Np, Kp) f32
    np_, kp = logits_ref.shape
    pad_rows = np_ > n_valid
    pad_cols = kp > k_valid

    x = logits_ref[...].astype(jnp.float32)
    q = x * inv_epsilon                    # divide-by-epsilon -> constant multiply
    q = q - jnp.max(q)                     # global max subtraction
    Qt = jnp.exp(q)                        # (Np, Kp) == torch Q.T, entries in [0, 1]
    # NOTE: torch's shoot_infs(Q) here is dead after the max subtraction
    # (exp(q - max) <= 1 can never be inf) and is intentionally dropped.

    # global normalization: Q /= sum(Q)  (scalar reciprocal + one full-array mult)
    Qt = Qt * (1.0 / jnp.sum(Qt))

    # loop-invariant constants, hoisted (no in-loop broadcast/ones construction)
    c = 1.0 / n_valid                      # torch: c = ones(N) / N
    r = r_ref[...]                         # (1, Kp); zero in padded columns
    ones8 = jnp.ones((8, np_), jnp.float32)  # MXU helper for the axis-0 reduction
    if pad_cols:
        col_valid = lax.broadcasted_iota(jnp.int32, (1, kp), 1) < k_valid
    if pad_rows:
        row_valid = lax.broadcasted_iota(jnp.int32, (np_, 1), 0) < n_valid

    def col_sums(Q):
        # torch: Q.sum(dim=1) -> here: sum over the batch axis.  Routed to the
        # otherwise-idle MXU as ones(8, Np) @ Q; row 0 of the product is the
        # column-sum vector (keeping the LHS 8 rows tall avoids a degenerate
        # matmul shape at zero extra MXU cost).
        s = jnp.dot(ones8, Q, preferred_element_type=jnp.float32)[0:1, :]  # (1, Kp)
        if pad_cols:
            s = jnp.where(col_valid, s, 1.0)   # keep padded columns inert
        return s

    def row_sums(Q):
        # torch: Q.sum(dim=0) -> here: the cheap lane reduction; left on the
        # VPU/XLU so it overlaps with the MXU column-sum of the same iteration.
        s = jnp.sum(Q, axis=1, keepdims=True)  # (Np, 1)
        if pad_rows:
            s = jnp.where(row_valid, s, 1.0)   # keep padded rows inert
        return s

    # num_iters is a small static constant -> fully unroll the Sinkhorn loop.
    for _ in range(num_iters):
        u = r / col_sums(Qt)               # (1, Kp) divide: tiny, kept exact
        u = _shoot_infs(u)
        Qt = Qt * u                        # torch: Q *= u.unsqueeze(1)
        Qt = Qt * (c / row_sums(Qt))       # torch: Q *= (c / Q.sum(0)).unsqueeze(0)

    # torch: (Q / Q.sum(dim=0, keepdim=True)).t() -> divide each row by its sum.
    # Exact reciprocal on the small (Np, 1) vector, then one full-array multiply.
    inv_row = pl.reciprocal(row_sums(Qt))
    out_ref[...] = (Qt * inv_row).astype(jnp.float32)


class SinkhornKnoppPallas:
    """Pallas port of SinkhornKnopp.forward (no_grad path)."""

    def __init__(self, num_iters_sk=3, epsilon_sk=0.05, imb_factor=1.0):
        self.num_iters = int(num_iters_sk)
        self.epsilon = float(epsilon_sk)
        self.imb_factor = float(imb_factor)

    def _row_marginals(self, logits):
        """Glue: compute the r vector (length K = num prototypes) in plain JAX."""
        # TODO(synk): for imb_factor > 1 this re-reads logits and redoes the exp
        # pass in XLA; fusing it into the kernel (extra (1,K) output plus a
        # scalar-prefetched permutation) would halve HBM traffic on that path.
        N, K = logits.shape
        if self.imb_factor > 1:
            q = logits.astype(jnp.float32) / self.epsilon
            q = q - jnp.max(q)
            proto_mass = jnp.sum(jnp.exp(q), axis=0)     # == torch Q.sum(1), (K,)
            marg_argsort = jnp.argsort(proto_mass)
            i = jnp.arange(K, dtype=jnp.float32)
            r = (1.0 / self.imb_factor) ** (i / (K - 1.0))
            r = r * (N / K)
            r = r.at[marg_argsort].set(jnp.sort(r))
            r = jnp.maximum(r, 1.0)
            r = r / jnp.sum(r)
        else:
            r = jnp.ones((K,), jnp.float32) / K
        return r.reshape(1, K)

    def __call__(self, logits):
        N, K = logits.shape
        r = self._row_marginals(logits)

        # Lane/sublane-dense padding: K -> multiple of 128, N -> multiple of 8.
        # Padded logits are -inf (exp -> exactly 0); padded marginals are 0.
        Np, Kp = _round_up(N, 8), _round_up(K, 128)
        if (Np, Kp) != (N, K):
            logits = jnp.pad(logits, ((0, Np - N), (0, Kp - K)),
                             constant_values=-jnp.inf)
            r = jnp.pad(r, ((0, 0), (0, Kp - K)))

        kernel = functools.partial(
            _sinkhorn_kernel,
            num_iters=self.num_iters,
            inv_epsilon=1.0 / self.epsilon,
            n_valid=N,
            k_valid=K,
        )

        # Whole problem is VMEM-resident (no grid): input + f32 Q + output + slack.
        # TODO(synk): for N*K beyond VMEM (notably v7x: 64 MiB, 2 TCs) re-tile with
        # an N grid, a (1,K) column-sum VMEM accumulator, and a per-core N split.
        vmem_limit = int(min(100 * 2**20, 6 * Np * Kp * 4 + 8 * 2**20))

        out = pl.pallas_call(
            kernel,
            out_shape=jax.ShapeDtypeStruct((Np, Kp), jnp.float32),
            in_specs=[
                pl.BlockSpec(memory_space=pltpu.MemorySpace.VMEM),
                pl.BlockSpec(memory_space=pltpu.MemorySpace.VMEM),
            ],
            out_specs=pl.BlockSpec(memory_space=pltpu.MemorySpace.VMEM),
            compiler_params=pltpu.CompilerParams(vmem_limit_bytes=vmem_limit),
        )(logits, r)
        return out[:N, :K]


def _reference(logits, num_iters, epsilon, r):
    """Pure-JAX reference matching the PyTorch math (for the sanity check)."""
    q = logits.astype(jnp.float32) / epsilon
    q = q - jnp.max(q)
    Q = jnp.exp(q).T                       # (K, N)
    Q = Q / jnp.sum(Q)
    K, N = Q.shape
    c = jnp.ones((N,), jnp.float32) / N
    rr = r.reshape(K)
    for _ in range(num_iters):
        u = rr / jnp.sum(Q, axis=1)
        u = _shoot_infs(u)
        Q = Q * u[:, None]
        Q = Q * (c / jnp.sum(Q, axis=0))[None, :]
    return (Q / jnp.sum(Q, axis=0, keepdims=True)).T


def _check(sk, logits):
    N, K = logits.shape
    out = jax.block_until_ready(sk(logits))
    ref = _reference(logits, sk.num_iters, sk.epsilon, sk._row_marginals(logits))
    assert out.shape == (N, K)
    assert out.dtype == jnp.float32
    assert bool(jnp.all(jnp.isfinite(out)))
    # structural property of the forward pass: each output row sums to 1
    assert bool(jnp.allclose(jnp.sum(out, axis=1), 1.0, atol=1e-3))
    # tolerance leaves headroom for the MXU-routed batch reduction and the
    # reciprocal-multiply rewrites; the exact-math variant matched at 1e-5.
    assert bool(jnp.allclose(out, ref, atol=1e-5, rtol=3e-3)), float(
        jnp.max(jnp.abs(out - ref)))


if __name__ == "__main__":
    # Deterministic "args" for the module (synthetic, no checkpoint).
    num_iters_sk = 3
    epsilon_sk = 0.05
    imb_factor = 1.0

    sk = SinkhornKnoppPallas(num_iters_sk, epsilon_sk, imb_factor)
    key0, key1 = jax.random.split(jax.random.PRNGKey(0))

    # main case: (batch=8, prototypes=32); exercises lane padding 32 -> 128
    logits = jax.random.normal(key0, (8, 32), dtype=jnp.float32)
    _check(sk, logits)

    # ragged case: exercises both row (5 -> 8) and column (40 -> 128) padding
    logits2 = jax.random.normal(key1, (5, 40), dtype=jnp.float32)
    _check(sk, logits2)

    print("KERNEL_OK")
</pallas_src>

<mosaic_0001>
module attributes {stable_mosaic.version = 11 : i64} {
  func.func @_sinkhorn_kernel(%arg0: memref<8x128xf32, #tpu.memory_space<vmem>>, %arg1: memref<1x128xf32, #tpu.memory_space<vmem>>, %arg2: memref<8x128xf32, #tpu.memory_space<vmem>>) attributes {dimension_semantics = [], scalar_prefetch = 0 : i64, scratch_operands = 0 : i64, tpu.core_type = #tpu.core_type<tc>} {
    %c0 = arith.constant 0 : index
    %c0_0 = arith.constant 0 : index
    %0 = vector.load %arg0[%c0, %c0_0] : memref<8x128xf32, #tpu.memory_space<vmem>>, vector<8x128xf32>
    %cst = arith.constant 2.000000e+01 : f32
    %1 = vector.broadcast %cst : f32 to vector<8x128xf32>
    %2 = arith.mulf %0, %1 : vector<8x128xf32>
    %3 = vector.shape_cast %2 : vector<8x128xf32> to vector<1x8x128xf32>
    %cst_1 = arith.constant dense<0xFF800000> : vector<1xf32>
    %4 = vector.multi_reduction <maximumf>, %3, %cst_1 [1, 2] : vector<1x8x128xf32> to vector<1xf32>
    %5 = vector.shape_cast %4 : vector<1xf32> to vector<1x1x1xf32>
    %6 = vector.extract %5[0, 0, 0] : f32 from vector<1x1x1xf32>
    %7 = vector.broadcast %6 : f32 to vector<8x128xf32>
    %8 = arith.subf %2, %7 : vector<8x128xf32>
    %9 = math.exp %8 : vector<8x128xf32>
    %10 = vector.shape_cast %9 : vector<8x128xf32> to vector<1x8x128xf32>
    %cst_2 = arith.constant dense<0.000000e+00> : vector<1xf32>
    %11 = vector.multi_reduction <add>, %10, %cst_2 [1, 2] : vector<1x8x128xf32> to vector<1xf32>
    %12 = vector.shape_cast %11 : vector<1xf32> to vector<1x1x1xf32>
    %13 = vector.extract %12[0, 0, 0] : f32 from vector<1x1x1xf32>
    %cst_3 = arith.constant 1.000000e+00 : f32
    %14 = arith.divf %cst_3, %13 : f32
    %15 = vector.broadcast %14 : f32 to vector<8x128xf32>
    %16 = arith.mulf %9, %15 : vector<8x128xf32>
    %c0_4 = arith.constant 0 : index
    %c0_5 = arith.constant 0 : index
    %17 = vector.load %arg1[%c0_4, %c0_5] : memref<1x128xf32, #tpu.memory_space<vmem>>, vector<1x128xf32>
    %cst_6 = arith.constant 1.000000e+00 : f32
    %18 = vector.broadcast %cst_6 : f32 to vector<8x8xf32>
    %19 = tpu.iota {dimensions = array<i32: 1>} : vector<1x128xi32>
    %c32_i32 = arith.constant 32 : i32
    %20 = vector.broadcast %c32_i32 : i32 to vector<1x128xi32>
    %21 = arith.cmpi slt, %19, %20 : vector<1x128xi32>
    %cst_7 = arith.constant dense<0.000000e+00> : vector<8x128xf32>
    %22 = tpu.matmul %18, %16, %cst_7 {dimension_numbers = #tpu.dot_dimension_numbers<[1], [0], [0], [1], [0, 0, 1, 1], [], []>} : vector<8x8xf32>, vector<8x128xf32>, vector<8x128xf32> -> vector<8x128xf32>
    %23 = vector.extract_strided_slice %22 {offsets = [0, 0], sizes = [1, 128], strides = [1, 1]} : vector<8x128xf32> to vector<1x128xf32>
    %cst_8 = arith.constant 1.000000e+00 : f32
    %24 = vector.broadcast %cst_8 : f32 to vector<1x128xf32>
    %25 = arith.select %21, %23, %24 : vector<1x128xi1>, vector<1x128xf32>
    %26 = arith.divf %17, %25 : vector<1x128xf32>
    %27 = math.absf %26 : vector<1x128xf32>
    %cst_9 = arith.constant 0x7F800000 : f32
    %28 = vector.broadcast %cst_9 : f32 to vector<1x128xf32>
    %29 = arith.cmpf oeq, %27, %28 : vector<1x128xf32>
    %cst_10 = arith.constant 0.000000e+00 : f32
    %30 = vector.broadcast %cst_10 : f32 to vector<1x128xf32>
    %31 = arith.select %29, %30, %26 : vector<1x128xi1>, vector<1x128xf32>
    %32 = vector.shape_cast %31 : vector<1x128xf32> to vector<1x1x128xf32>
    %cst_11 = arith.constant dense<0xFF800000> : vector<1xf32>
    %33 = vector.multi_reduction <maximumf>, %32, %cst_11 [1, 2] : vector<1x1x128xf32> to vector<1xf32>
    %34 = vector.shape_cast %33 : vector<1xf32> to vector<1x1x1xf32>
    %35 = vector.extract %34[0, 0, 0] : f32 from vector<1x1x1xf32>
    %36 = vector.broadcast %35 : f32 to vector<1x128xf32>
    %37 = arith.select %29, %36, %31 : vector<1x128xi1>, vector<1x128xf32>
    %38 = vector.broadcast %37 : vector<1x128xf32> to vector<8x128xf32>
    %39 = arith.mulf %16, %38 : vector<8x128xf32>
    %cst_12 = arith.constant dense<0.000000e+00> : vector<8xf32>
    %40 = vector.multi_reduction <add>, %39, %cst_12 [1] : vector<8x128xf32> to vector<8xf32>
    %41 = vector.shape_cast %40 : vector<8xf32> to vector<8x1xf32>
    %cst_13 = arith.constant 1.250000e-01 : f32
    %42 = vector.broadcast %cst_13 : f32 to vector<8x1xf32>
    %43 = arith.divf %42, %41 : vector<8x1xf32>
    %44 = vector.broadcast %43 : vector<8x1xf32> to vector<8x128xf32>
    %45 = arith.mulf %39, %44 : vector<8x128xf32>
    %cst_14 = arith.constant dense<0.000000e+00> : vector<8x128xf32>
    %46 = tpu.matmul %18, %45, %cst_14 {dimension_numbers = #tpu.dot_dimension_numbers<[1], [0], [0], [1], [0, 0, 1, 1], [], []>} : vector<8x8xf32>, vector<8x128xf32>, vector<8x128xf32> -> vector<8x128xf32>
    %47 = vector.extract_strided_slice %46 {offsets = [0, 0], sizes = [1, 128], strides = [1, 1]} : vector<8x128xf32> to vector<1x128xf32>
    %cst_15 = arith.constant 1.000000e+00 : f32
    %48 = vector.broadcast %cst_15 : f32 to vector<1x128xf32>
    %49 = arith.select %21, %47, %48 : vector<1x128xi1>, vector<1x128xf32>
    %50 = arith.divf %17, %49 : vector<1x128xf32>
    %51 = math.absf %50 : vector<1x128xf32>
    %cst_16 = arith.constant 0x7F800000 : f32
    %52 = vector.broadcast %cst_16 : f32 to vector<1x128xf32>
    %53 = arith.cmpf oeq, %51, %52 : vector<1x128xf32>
    %cst_17 = arith.constant 0.000000e+00 : f32
    %54 = vector.broadcast %cst_17 : f32 to vector<1x128xf32>
    %55 = arith.select %53, %54, %50 : vector<1x128xi1>, vector<1x128xf32>
    %56 = vector.shape_cast %55 : vector<1x128xf32> to vector<1x1x128xf32>
    %cst_18 = arith.constant dense<0xFF800000> : vector<1xf32>
    %57 = vector.multi_reduction <maximumf>, %56, %cst_18 [1, 2] : vector<1x1x128xf32> to vector<1xf32>
    %58 = vector.shape_cast %57 : vector<1xf32> to vector<1x1x1xf32>
    %59 = vector.extract %58[0, 0, 0] : f32 from vector<1x1x1xf32>
    %60 = vector.broadcast %59 : f32 to vector<1x128xf32>
    %61 = arith.select %53, %60, %55 : vector<1x128xi1>, vector<1x128xf32>
    %62 = vector.broadcast %61 : vector<1x128xf32> to vector<8x128xf32>
    %63 = arith.mulf %45, %62 : vector<8x128xf32>
    %cst_19 = arith.constant dense<0.000000e+00> : vector<8xf32>
    %64 = vector.multi_reduction <add>, %63, %cst_19 [1] : vector<8x128xf32> to vector<8xf32>
    %65 = vector.shape_cast %64 : vector<8xf32> to vector<8x1xf32>
    %cst_20 = arith.constant 1.250000e-01 : f32
    %66 = vector.broadcast %cst_20 : f32 to vector<8x1xf32>
    %67 = arith.divf %66, %65 : vector<8x1xf32>
    %68 = vector.broadcast %67 : vector<8x1xf32> to vector<8x128xf32>
    %69 = arith.mulf %63, %68 : vector<8x128xf32>
    %cst_21 = arith.constant dense<0.000000e+00> : vector<8x128xf32>
    %70 = tpu.matmul %18, %69, %cst_21 {dimension_numbers = #tpu.dot_dimension_numbers<[1], [0], [0], [1], [0, 0, 1, 1], [], []>} : vector<8x8xf32>, vector<8x128xf32>, vector<8x128xf32> -> vector<8x128xf32>
    %71 = vector.extract_strided_slice %70 {offsets = [0, 0], sizes = [1, 128], strides = [1, 1]} : vector<8x128xf32> to vector<1x128xf32>
    %cst_22 = arith.constant 1.000000e+00 : f32
    %72 = vector.broadcast %cst_22 : f32 to vector<1x128xf32>
    %73 = arith.select %21, %71, %72 : vector<1x128xi1>, vector<1x128xf32>
    %74 = arith.divf %17, %73 : vector<1x128xf32>
    %75 = math.absf %74 : vector<1x128xf32>
    %cst_23 = arith.constant 0x7F800000 : f32
    %76 = vector.broadcast %cst_23 : f32 to vector<1x128xf32>
    %77 = arith.cmpf oeq, %75, %76 : vector<1x128xf32>
    %cst_24 = arith.constant 0.000000e+00 : f32
    %78 = vector.broadcast %cst_24 : f32 to vector<1x128xf32>
    %79 = arith.select %77, %78, %74 : vector<1x128xi1>, vector<1x128xf32>
    %80 = vector.shape_cast %79 : vector<1x128xf32> to vector<1x1x128xf32>
    %cst_25 = arith.constant dense<0xFF800000> : vector<1xf32>
    %81 = vector.multi_reduction <maximumf>, %80, %cst_25 [1, 2] : vector<1x1x128xf32> to vector<1xf32>
    %82 = vector.shape_cast %81 : vector<1xf32> to vector<1x1x1xf32>
    %83 = vector.extract %82[0, 0, 0] : f32 from vector<1x1x1xf32>
    %84 = vector.broadcast %83 : f32 to vector<1x128xf32>
    %85 = arith.select %77, %84, %79 : vector<1x128xi1>, vector<1x128xf32>
    %86 = vector.broadcast %85 : vector<1x128xf32> to vector<8x128xf32>
    %87 = arith.mulf %69, %86 : vector<8x128xf32>
    %cst_26 = arith.constant dense<0.000000e+00> : vector<8xf32>
    %88 = vector.multi_reduction <add>, %87, %cst_26 [1] : vector<8x128xf32> to vector<8xf32>
    %89 = vector.shape_cast %88 : vector<8xf32> to vector<8x1xf32>
    %cst_27 = arith.constant 1.250000e-01 : f32
    %90 = vector.broadcast %cst_27 : f32 to vector<8x1xf32>
    %91 = arith.divf %90, %89 : vector<8x1xf32>
    %92 = vector.broadcast %91 : vector<8x1xf32> to vector<8x128xf32>
    %93 = arith.mulf %87, %92 : vector<8x128xf32>
    %cst_28 = arith.constant dense<0.000000e+00> : vector<8xf32>
    %94 = vector.multi_reduction <add>, %93, %cst_28 [1] : vector<8x128xf32> to vector<8xf32>
    %95 = vector.shape_cast %94 : vector<8xf32> to vector<8x1xf32>
    %96 = tpu.reciprocal %95 : vector<8x1xf32> -> vector<8x1xf32>
    %97 = vector.broadcast %96 : vector<8x1xf32> to vector<8x128xf32>
    %98 = arith.mulf %93, %97 : vector<8x128xf32>
    %c0_29 = arith.constant 0 : index
    %c0_30 = arith.constant 0 : index
    %99 = vector.load %arg2[%c0_29, %c0_30] : memref<8x128xf32, #tpu.memory_space<vmem>>, vector<8x128xf32>
    tpu.vector_store %arg2[%c0_29, %c0_30], %98 {strides = array<i32>} : memref<8x128xf32, #tpu.memory_space<vmem>>, vector<8x128xf32>,
    return
  }
}

</mosaic_0001>

<llo_original>
// kernel: tpu_custom_call.1
$region0: #{tpu_custom_call.1}
  #allocation0 [shape = 'u32[]', space=smem, size = 0x4, offset = 0x4, fixed_abs, tag = 'smem constant byte address 0x4 - core index']
  #allocation1 [shape = 'u32[144,128]{1,0:T(1,128)}', space=vmem, size = 0x12000, scoped, tag = 'internal scratch']
  %s0 = inlined_call_operand.hbm [shape: f32[8,128], index: 0, kind: input, shape index: {}]
  %s1 = inlined_call_operand.vmem [shape: f32[1,128], index: 1, kind: input, shape index: {}]
  %s2 = inlined_call_operand.hbm [shape: f32[8,128], index: 2, kind: output, shape index: {}]
  %s3 = sld [smem:[#allocation0]]
  $region22: #{tpu_custom_call.1} parent=0
    _
  %s5 = ssub.s32 1, %s3
  %s6 = scalar_select 0, %s5, %s3
  $region1: #{tpu_custom_call.1} parent=0
    #allocation2 [shape = 'u8[4096]{0}', space=vmem, size = 0x1000, scoped, tag = 'input window, operand 0, single buffered']
    #allocation3 [shape = 's32[1]{0}', space=sflag, size = 0x4, scoped, tag = 'scoped memory for tpu_custom_call.1']
    #allocation4 [shape = 's32[1]{0}', space=sflag, size = 0x4, scoped, tag = 'scoped memory for tpu_custom_call.1']
    #allocation5 [shape = 'u8[4096]{0}', space=vmem, size = 0x1000, scoped, tag = 'output window, operand 0, single buffered']
    %7 = vsyncpa [#allocation3], 0
    %8 = vsyncpa [#allocation4], 0
    // Predicated region
    $region2: #{tpu_custom_call.1} parent=1 // pred_check
      _
    $region3: #{tpu_custom_call.1} parent=1 // pred_check_branch
      %10 = sbr.rel (0) target = $region5
    $region4: #{tpu_custom_call.1} parent=1 // pred_region
      %s12 = ssub.s32 128, 128
      %13 = vsyncadd [#allocation3], %s12
      %s15 = sshll.u32 [#allocation2], 4
      %s16 = int_to_ptr.vmem [resolvable:$true] %s15
      %18 = dma.hbm_to_vmem [thread:$0]  %s0, 128, %s16, [#allocation3]
    $region5: #{tpu_custom_call.1} parent=1 // pred_fallthru
      _
    // Predicated region
    $region6: #{tpu_custom_call.1} parent=1 // pred_check
      _
    $region7: #{tpu_custom_call.1} parent=1 // pred_check_branch
      %20 = sbr.rel (0) target = $region9
    $region8: #{tpu_custom_call.1} parent=1 // pred_region
      _
    $region9: #{tpu_custom_call.1} parent=1 // pred_fallthru
      _
    // Predicated region
    $region10: #{tpu_custom_call.1} parent=1 // pred_check
      _
    $region11: #{tpu_custom_call.1} parent=1 // pred_check_branch
      %22 = sbr.rel (0) target = $region13
    $region12: #{tpu_custom_call.1} parent=1 // pred_region
      %23 = dma.done [#allocation3], 128
    $region13: #{tpu_custom_call.1} parent=1 // pred_fallthru
      _
    %v24 = vld [vmem:[#allocation2] sm:$0xff]
    %v25 = vmul.f32 %v24, 20.0
    %26 = vmax.xlane.f32.xlu0 %v25
    %v27 = vpop.xlane.xlu0 %26
    %v28 = vrot.slane %v27, 4
    %v29 = vmax.f32 %v27, %v28
    %v30 = vrot.slane %v29, 2
    %v31 = vmax.f32 %v29, %v30
    %v32 = vrot.slane %v31, 1
    %v33 = vmax.f32 %v31, %v32
    %s34 = vtos %v33
    %v35 = vstv %s34
    %v36 = vsub.f32 %v25, %v35
    %v37 = vmul.f32 %v36, 1.442695
    %v38 = vpow.pop %v37
    %39 = vadd.xlane.f32.xlu0 %v38
    %v40 = vpop.xlane.xlu0 %39
    %v41 = vrot.slane %v40, 4
    %v42 = vadd.f32 %v40, %v41
    %v43 = vrot.slane %v42, 2
    %v44 = vadd.f32 %v42, %v43
    %v45 = vrot.slane %v44, 1
    %v46 = vadd.f32 %v44, %v45
    %s47 = vtos %v46
    %v48 = vstv %s47
    %v49 = vrcp.pop %v48
    %s50 = vtos %v49
    %v51 = vstv %s50
    %v52 = vmul.f32 %v38, %v51
    %v53 = vld [vmem:[%s1] sm:$0x1]
    %v54 = vlaneseq
    %v55 = vand.u32 %v54, 127
    %vm56 = vcmp.lt.s32.totalorder %v55, 32
    %vm57 = vcmask 64512
    %v59 = vsel %vm57, 1.0, 0
    %61 = vmatprep.subr.mxu0 0.0
    %62 = vmatpush1.msra.mxu0 %v52
    %63 = vmatprep.subr.mxu0 0.0
    %64 = vmatpush1.msra.mxu0 0.0
    %65 = vmatprep.subr.mxu0 0.0
    %66 = vmatpush1.msra.mxu0 0.0
    %67 = vmatprep.subr.mxu0 0.0
    %68 = vmatpush1.msra.mxu0 0.0
    %69 = vmatprep.subr.mxu0 0.0
    %70 = vmatpush1.msra.mxu0 0.0
    %71 = vmatprep.subr.mxu0 0.0
    %72 = vmatpush1.msra.mxu0 0.0
    %73 = vmatprep.subr.mxu0 0.0
    %74 = vmatpush1.msra.mxu0 0.0
    %75 = vmatprep.subr.mxu0 0.0
    %76 = vmatpush1.msra.mxu0 0.0
    %77 = vmatprep.subr.mxu0 0.0
    %78 = vmatpush1.msra.mxu0 0.0
    %79 = vmatprep.subr.mxu0 0.0
    %80 = vmatpush1.msra.mxu0 0.0
    %81 = vmatprep.subr.mxu0 0.0
    %82 = vmatpush1.msra.mxu0 0.0
    %83 = vmatprep.subr.mxu0 0.0
    %84 = vmatpush1.msra.mxu0 0.0
    %85 = vmatprep.subr.mxu0 0.0
    %86 = vmatpush1.msra.mxu0 0.0
    %87 = vmatprep.subr.mxu0 0.0
    %88 = vmatpush1.msra.mxu0 0.0
    %89 = vmatprep.subr.mxu0 0.0
    %90 = vmatpush1.msra.mxu0 0.0
    %91 = vmatprep.subr.mxu0 0.0
    %92 = vmatpush1.msra.mxu0 0.0
    %93 = vmatprep.subr.mxu0 0.0
    %94 = vmatpush1.msra.mxu0 0.0
    %95 = vmatprep.subr.mxu0 0.0
    %96 = vmatpush1.msra.mxu0 0.0
    %97 = vmatprep.subr.mxu0 0.0
    %98 = vmatpush1.msra.mxu0 0.0
    %99 = vmatprep.subr.mxu0 0.0
    %100 = vmatpush1.msra.mxu0 0.0
    %101 = vmatprep.subr.mxu0 0.0
    %102 = vmatpush1.msra.mxu0 0.0
    %103 = vmatprep.subr.mxu0 0.0
    %104 = vmatpush1.msra.mxu0 0.0
    %105 = vmatprep.subr.mxu0 0.0
    %106 = vmatpush1.msra.mxu0 0.0
    %107 = vmatprep.subr.mxu0 0.0
    %108 = vmatpush1.msra.mxu0 0.0
    %109 = vmatprep.subr.mxu0 0.0
    %110 = vmatpush1.msra.mxu0 0.0
    %111 = vmatprep.subr.mxu0 0.0
    %112 = vmatpush1.msra.mxu0 0.0
    %113 = vmatprep.subr.mxu0 0.0
    %114 = vmatpush1.msra.mxu0 0.0
    %115 = vmatprep.subr.mxu0 0.0
    %116 = vmatpush1.msra.mxu0 0.0
    %117 = vmatprep.subr.mxu0 0.0
    %118 = vmatpush1.msra.mxu0 0.0
    %119 = vmatprep.subr.mxu0 0.0
    %120 = vmatpush1.msra.mxu0 0.0
    %121 = vmatprep.subr.mxu0 0.0
    %122 = vmatpush1.msra.mxu0 0.0
    %123 = vmatprep.subr.mxu0 0.0
    %124 = vmatpush1.msra.mxu0 0.0
    %125 = vmatprep.mubr.f32.mxu0 0.0
    %126 = vmatmul.mubr.f32.gmra.mrb[0].mxu0 %v59
    %v127 = vpop.f32.mrb[0].mxu0
    %v128 = vadd.f32 0.0, %v127
    %v129 = vpop.f32.mrb[0].mxu0
    %130 = vdwg.mxu0
    %v131 = vsel %vm56, %v128, 1.0
    %v132 = vrcp.pop %v131
    %v133 = vmul.f32 %v53, %v132
    %v134 = vand.u32 2147483647, %v133
    %vm135 = vcmp.eq.f32.partialorder %v134, inf
    %v136 = vsel %vm135, 0.0, %v133
    %vm137 = vcmask 1040384
    %v138 = vsel %vm137, %v136, -inf
    %139 = vmax.xlane.f32.xlu0 %v138
    %v140 = vpop.xlane.xlu0 %139
    %v141 = vrot.slane %v140, 4
    %v142 = vmax.f32 %v140, %v141
    %v143 = vrot.slane %v142, 2
    %v144 = vmax.f32 %v142, %v143
    %v145 = vrot.slane %v144, 1
    %v146 = vmax.f32 %v144, %v145
    %s147 = vtos %v146
    %v148 = vstv %s147
    %v149 = vsel %vm135, %v148, %v133
    %v151 = vlaneseq
    %v152 = vshrl.u32 %v151, 7
    %v153 = vsub.s32 0, %v152
    %v154 = vrot.slane %v149, %v153
    %v156 = vmul.f32 %v52, %v154
    %157 = vadd.xlane.f32.xlu0 %v156
    %v158 = vpop.xlane.xlu0 %157
    %v159 = vrcp.pop %v158
    %v160 = vmul.f32 0.125, %v159
    %v161 = vmul.f32 %v156, %v160
    %162 = vmatprep.subr.mxu0 0.0
    %163 = vmatpush1.msra.mxu0 %v161
    %164 = vmatprep.subr.mxu0 0.0
    %165 = vmatpush1.msra.mxu0 0.0
    %166 = vmatprep.subr.mxu0 0.0
    %167 = vmatpush1.msra.mxu0 0.0
    %168 = vmatprep.subr.mxu0 0.0
    %169 = vmatpush1.msra.mxu0 0.0
    %170 = vmatprep.subr.mxu0 0.0
    %171 = vmatpush1.msra.mxu0 0.0
    %172 = vmatprep.subr.mxu0 0.0
    %173 = vmatpush1.msra.mxu0 0.0
    %174 = vmatprep.subr.mxu0 0.0
    %175 = vmatpush1.msra.mxu0 0.0
    %176 = vmatprep.subr.mxu0 0.0
    %177 = vmatpush1.msra.mxu0 0.0
    %178 = vmatprep.subr.mxu0 0.0
    %179 = vmatpush1.msra.mxu0 0.0
    %180 = vmatprep.subr.mxu0 0.0
    %181 = vmatpush1.msra.mxu0 0.0
    %182 = vmatprep.subr.mxu0 0.0
    %183 = vmatpush1.msra.mxu0 0.0
    %184 = vmatprep.subr.mxu0 0.0
    %185 = vmatpush1.msra.mxu0 0.0
    %186 = vmatprep.subr.mxu0 0.0
    %187 = vmatpush1.msra.mxu0 0.0
    %188 = vmatprep.subr.mxu0 0.0
    %189 = vmatpush1.msra.mxu0 0.0
    %190 = vmatprep.subr.mxu0 0.0
    %191 = vmatpush1.msra.mxu0 0.0
    %192 = vmatprep.subr.mxu0 0.0
    %193 = vmatpush1.msra.mxu0 0.0
    %194 = vmatprep.subr.mxu0 0.0
    %195 = vmatpush1.msra.mxu0 0.0
    %196 = vmatprep.subr.mxu0 0.0
    %197 = vmatpush1.msra.mxu0 0.0
    %198 = vmatprep.subr.mxu0 0.0
    %199 = vmatpush1.msra.mxu0 0.0
    %200 = vmatprep.subr.mxu0 0.0
    %201 = vmatpush1.msra.mxu0 0.0
    %202 = vmatprep.subr.mxu0 0.0
    %203 = vmatpush1.msra.mxu0 0.0
    %204 = vmatprep.subr.mxu0 0.0
    %205 = vmatpush1.msra.mxu0 0.0
    %206 = vmatprep.subr.mxu0 0.0
    %207 = vmatpush1.msra.mxu0 0.0
    %208 = vmatprep.subr.mxu0 0.0
    %209 = vmatpush1.msra.mxu0 0.0
    %210 = vmatprep.subr.mxu0 0.0
    %211 = vmatpush1.msra.mxu0 0.0
    %212 = vmatprep.subr.mxu0 0.0
    %213 = vmatpush1.msra.mxu0 0.0
    %214 = vmatprep.subr.mxu0 0.0
    %215 = vmatpush1.msra.mxu0 0.0
    %216 = vmatprep.subr.mxu0 0.0
    %217 = vmatpush1.msra.mxu0 0.0
    %218 = vmatprep.subr.mxu0 0.0
    %219 = vmatpush1.msra.mxu0 0.0
    %220 = vmatprep.subr.mxu0 0.0
    %221 = vmatpush1.msra.mxu0 0.0
    %222 = vmatprep.subr.mxu0 0.0
    %223 = vmatpush1.msra.mxu0 0.0
    %224 = vmatprep.subr.mxu0 0.0
    %225 = vmatpush1.msra.mxu0 0.0
    %226 = vmatprep.mubr.f32.mxu0 0.0
    %227 = vmatmul.mubr.f32.gmra.mrb[0].mxu0 %v59
    %v228 = vpop.f32.mrb[0].mxu0
    %v229 = vadd.f32 0.0, %v228
    %v230 = vpop.f32.mrb[0].mxu0
    %231 = vdwg.mxu0
    %v232 = vsel %vm56, %v229, 1.0
    %v233 = vrcp.pop %v232
    %v234 = vmul.f32 %v53, %v233
    %v235 = vand.u32 2147483647, %v234
    %vm236 = vcmp.eq.f32.partialorder %v235, inf
    %v237 = vsel %vm236, 0.0, %v234
    %v238 = vsel %vm137, %v237, -inf
    %239 = vmax.xlane.f32.xlu0 %v238
    %v240 = vpop.xlane.xlu0 %239
    %v241 = vrot.slane %v240, 4
    %v242 = vmax.f32 %v240, %v241
    %v243 = vrot.slane %v242, 2
    %v244 = vmax.f32 %v242, %v243
    %v245 = vrot.slane %v244, 1
    %v246 = vmax.f32 %v244, %v245
    %s247 = vtos %v246
    %v248 = vstv %s247
    %v249 = vsel %vm236, %v248, %v234
    %v251 = vlaneseq
    %v252 = vshrl.u32 %v251, 7
    %v253 = vsub.s32 0, %v252
    %v254 = vrot.slane %v249, %v253
    %v256 = vmul.f32 %v161, %v254
    %257 = vadd.xlane.f32.xlu0 %v256
    %v258 = vpop.xlane.xlu0 %257
    %v259 = vrcp.pop %v258
    %v260 = vmul.f32 0.125, %v259
    %v261 = vmul.f32 %v256, %v260
    %262 = vmatprep.subr.mxu0 0.0
    %263 = vmatpush1.msra.mxu0 %v261
    %264 = vmatprep.subr.mxu0 0.0
    %265 = vmatpush1.msra.mxu0 0.0
    %266 = vmatprep.subr.mxu0 0.0
    %267 = vmatpush1.msra.mxu0 0.0
    %268 = vmatprep.subr.mxu0 0.0
    %269 = vmatpush1.msra.mxu0 0.0
    %270 = vmatprep.subr.mxu0 0.0
    %271 = vmatpush1.msra.mxu0 0.0
    %272 = vmatprep.subr.mxu0 0.0
    %273 = vmatpush1.msra.mxu0 0.0
    %274 = vmatprep.subr.mxu0 0.0
    %275 = vmatpush1.msra.mxu0 0.0
    %276 = vmatprep.subr.mxu0 0.0
    %277 = vmatpush1.msra.mxu0 0.0
    %278 = vmatprep.subr.mxu0 0.0
    %279 = vmatpush1.msra.mxu0 0.0
    %280 = vmatprep.subr.mxu0 0.0
    %281 = vmatpush1.msra.mxu0 0.0
    %282 = vmatprep.subr.mxu0 0.0
    %283 = vmatpush1.msra.mxu0 0.0
    %284 = vmatprep.subr.mxu0 0.0
    %285 = vmatpush1.msra.mxu0 0.0
    %286 = vmatprep.subr.mxu0 0.0
    %287 = vmatpush1.msra.mxu0 0.0
    %288 = vmatprep.subr.mxu0 0.0
    %289 = vmatpush1.msra.mxu0 0.0
    %290 = vmatprep.subr.mxu0 0.0
    %291 = vmatpush1.msra.mxu0 0.0
    %292 = vmatprep.subr.mxu0 0.0
    %293 = vmatpush1.msra.mxu0 0.0
    %294 = vmatprep.subr.mxu0 0.0
    %295 = vmatpush1.msra.mxu0 0.0
    %296 = vmatprep.subr.mxu0 0.0
    %297 = vmatpush1.msra.mxu0 0.0
    %298 = vmatprep.subr.mxu0 0.0
    %299 = vmatpush1.msra.mxu0 0.0
    %300 = vmatprep.subr.mxu0 0.0
    %301 = vmatpush1.msra.mxu0 0.0
    %302 = vmatprep.subr.mxu0 0.0
    %303 = vmatpush1.msra.mxu0 0.0
    %304 = vmatprep.subr.mxu0 0.0
    %305 = vmatpush1.msra.mxu0 0.0
    %306 = vmatprep.subr.mxu0 0.0
    %307 = vmatpush1.msra.mxu0 0.0
    %308 = vmatprep.subr.mxu0 0.0
    %309 = vmatpush1.msra.mxu0 0.0
    %310 = vmatprep.subr.mxu0 0.0
    %311 = vmatpush1.msra.mxu0 0.0
    %312 = vmatprep.subr.mxu0 0.0
    %313 = vmatpush1.msra.mxu0 0.0
    %314 = vmatprep.subr.mxu0 0.0
    %315 = vmatpush1.msra.mxu0 0.0
    %316 = vmatprep.subr.mxu0 0.0
    %317 = vmatpush1.msra.mxu0 0.0
    %318 = vmatprep.subr.mxu0 0.0
    %319 = vmatpush1.msra.mxu0 0.0
    %320 = vmatprep.subr.mxu0 0.0
    %321 = vmatpush1.msra.mxu0 0.0
    %322 = vmatprep.subr.mxu0 0.0
    %323 = vmatpush1.msra.mxu0 0.0
    %324 = vmatprep.subr.mxu0 0.0
    %325 = vmatpush1.msra.mxu0 0.0
    %326 = vmatprep.mubr.f32.mxu0 0.0
    %327 = vmatmul.mubr.f32.gmra.mrb[0].mxu0 %v59
    %v328 = vpop.f32.mrb[0].mxu0
    %v329 = vadd.f32 0.0, %v328
    %v330 = vpop.f32.mrb[0].mxu0
    %331 = vdwg.mxu0
    %v332 = vsel %vm56, %v329, 1.0
    %v333 = vrcp.pop %v332
    %v334 = vmul.f32 %v53, %v333
    %v335 = vand.u32 2147483647, %v334
    %vm336 = vcmp.eq.f32.partialorder %v335, inf
    %v337 = vsel %vm336, 0.0, %v334
    %v338 = vsel %vm137, %v337, -inf
    %339 = vmax.xlane.f32.xlu0 %v338
    %v340 = vpop.xlane.xlu0 %339
    %v341 = vrot.slane %v340, 4
    %v342 = vmax.f32 %v340, %v341
    %v343 = vrot.slane %v342, 2
    %v344 = vmax.f32 %v342, %v343
    %v345 = vrot.slane %v344, 1
    %v346 = vmax.f32 %v344, %v345
    %s347 = vtos %v346
    %v348 = vstv %s347
    %v349 = vsel %vm336, %v348, %v334
    %v351 = vlaneseq
    %v352 = vshrl.u32 %v351, 7
    %v353 = vsub.s32 0, %v352
    %v354 = vrot.slane %v349, %v353
    %v356 = vmul.f32 %v261, %v354
    %357 = vadd.xlane.f32.xlu0 %v356
    %v358 = vpop.xlane.xlu0 %357
    %v359 = vrcp.pop %v358
    %v360 = vmul.f32 0.125, %v359
    %v361 = vmul.f32 %v356, %v360
    %362 = vadd.xlane.f32.xlu0 %v361
    %v363 = vpop.xlane.xlu0 %362
    %v364 = vrcp.pop %v363
    %v365 = vmul.f32 %v361, %v364
    %366 = vst [vmem:[#allocation5] sm:$0xff] %v365
    // Predicated region
    $region14: #{tpu_custom_call.1} parent=1 // pred_check
      _
    $region15: #{tpu_custom_call.1} parent=1 // pred_check_branch
      %368 = sbr.rel (0) target = $region17
    $region16: #{tpu_custom_call.1} parent=1 // pred_region
      %s370 = ssub.s32 128, 128
      %371 = vsyncadd [#allocation4], %s370
      %s373 = sshll.u32 [#allocation5], 4
      %s374 = int_to_ptr.vmem [resolvable:$true] %s373
      %376 = dma.vmem_to_hbm [thread:$0]  %s374, 128, %s2, [#allocation4]
    $region17: #{tpu_custom_call.1} parent=1 // pred_fallthru
      _
    // Predicated region
    $region18: #{tpu_custom_call.1} parent=1 // pred_check
      _
    $region19: #{tpu_custom_call.1} parent=1 // pred_check_branch
      %378 = sbr.rel (0) target = $region21
    $region20: #{tpu_custom_call.1} parent=1 // pred_region
      %379 = dma.done [#allocation4], 128
    $region21: #{tpu_custom_call.1} parent=1 // pred_fallthru
      _
    %380 = vsyncpa [#allocation3], 1
    %381 = vsyncpa [#allocation4], 1

</llo_original>
